<compile_context>
chip_gen: v7x
topology: tpu7x:2x2x1
jax: 0.10.0
libtpu: 0.0.40
codegen_flags: <defaults>
</compile_context>

<pallas_src>
import jax
import jax.numpy as jnp
from jax.experimental import pallas as pl
from jax.experimental.pallas import tpu as pltpu


def _round_up(x: int, m: int) -> int:
    return ((x + m - 1) // m) * m


def _param_encoder_kernel(x_ref, w1_ref, b1_ref, w2_ref, b2_ref, o_ref):
    # First matmul on the MXU: (TB, P) @ (P, E), f32 accumulation.
    h = jnp.dot(x_ref[...], w1_ref[...], preferred_element_type=jnp.float32)
    h = h + b1_ref[...].astype(jnp.float32)          # (1, E) bias broadcasts over rows
    # LeakyReLU (PyTorch default slope 0.01): mul+max is one VALU op fewer than cmp+select.
    h = jnp.maximum(h, 0.01 * h)
    # Second matmul: (TB, E) @ (E, TN).  h is cast to the weight dtype so bf16
    # weights take the fast bf16 MXU path (no-op when weights are f32).
    y = jnp.dot(h.astype(w2_ref.dtype), w2_ref[...], preferred_element_type=jnp.float32)
    y = y + b2_ref[...].astype(jnp.float32)
    o_ref[...] = y.astype(o_ref.dtype)


def prepare_params(w1, b1, w2, b2):
    """One-time parameter prep (do NOT call per forward): pad embed_dim up to a
    lane-dense multiple of 128.  Zero padding is exact: padded h columns are
    LeakyReLU(0)=0 and padded w2/b2 entries are 0, so padded output columns are 0.

    If loading real PyTorch parameters, also transpose weights to (in, out) and
    reshape biases to (1, out) here — once, offline — not per call."""
    embed_dim = w1.shape[1]
    E = _round_up(embed_dim, 128)
    pe = E - embed_dim
    w1p = jnp.pad(w1, ((0, 0), (0, pe)))
    b1p = jnp.pad(b1, ((0, 0), (0, pe)))
    w2p = jnp.pad(w2, ((0, pe), (0, pe)))
    b2p = jnp.pad(b2, ((0, 0), (0, pe)))
    return (w1p, b1p, w2p, b2p), embed_dim


def parameter_encoder_forward(x, params, embed_dim, *, block_batch=256):
    """x: (batch, pars_dim) -> (batch, 1, embed_dim).  `params` from prepare_params()."""
    w1, b1, w2, b2 = params
    batch, pars_dim = x.shape
    E = w1.shape[1]                       # lane-dense (multiple of 128) embed dim
    assert E % 128 == 0 and w2.shape == (E, E)

    # Batch tile: multiple of 8 sublanes; aim for >= 2 batch steps when the batch
    # allows it so both v7x TensorCores get work (v5e/v6e have 1 TC).  For v5e's
    # smaller default scoped VMEM, pass block_batch=128 at large embed_dim.
    tb_cap = _round_up(max(int(block_batch), 8), 8)
    TB = max(8, min(tb_cap, _round_up(pl.cdiv(batch, 2), 8)))
    grid_b = pl.cdiv(batch, TB)           # ragged last tile handled by Pallas masking

    # N tile over the second matmul's output columns: bounds the w2 VMEM block
    # (the only O(E^2) buffer) so the kernel scales on v7x's 64 MiB VMEM.
    w2_itemsize = jnp.dtype(w2.dtype).itemsize
    W2_BLOCK_BUDGET = 8 * 1024 * 1024
    TN = E
    while TN > 128 and E * TN * w2_itemsize > W2_BLOCK_BUDGET:
        TN = max(128, _round_up(TN // 2, 128))
    grid_n = pl.cdiv(E, TN)

    # TODO(synk): if TB and E ever both get huge, K-tile the second matmul's
    # contraction (f32 VMEM accumulator + pl.when init/finalize) to shrink the
    # (TB, E) f32 h temp; unnecessary at the shapes this module is used with.

    # Constant-index weights get a single resident buffer; w2 only needs
    # double-buffering when its block index actually changes (grid_n > 1).
    resident = pl.Buffered(1)
    w2_mode = pl.Buffered(1) if grid_n == 1 else pl.Buffered(2)

    x_it = jnp.dtype(x.dtype).itemsize
    out_it = x_it
    vmem_needed = (
        pars_dim * E * jnp.dtype(w1.dtype).itemsize            # w1 (resident, 1 buf)
        + E * jnp.dtype(b1.dtype).itemsize                     # b1 (resident)
        + E * TN * w2_itemsize * (1 if grid_n == 1 else 2)     # w2 block(s)
        + TN * jnp.dtype(b2.dtype).itemsize * 2                # b2 blocks
        + TB * pars_dim * x_it * 2                             # x tiles (double-buffered)
        + TB * TN * out_it * 2                                 # out tiles (double-buffered)
        + TB * E * 4                                           # f32 h temp
        + TB * TN * 4                                          # f32 y temp
    )
    vmem_limit = int(min(max(vmem_needed * 3 // 2 + (1 << 20), 16 * 1024 * 1024),
                         64 * 1024 * 1024))

    flops = 2 * batch * (pars_dim * E + E * E)
    bytes_accessed = (
        batch * pars_dim * x_it + batch * E * out_it
        + sum(int(p.size) * jnp.dtype(p.dtype).itemsize for p in params)
    )

    # Grid: N outer, batch inner -> the w2 block index is constant across the inner
    # batch loop so it is not re-fetched; the tiny x tile is the only per-step DMA.
    out = pl.pallas_call(
        _param_encoder_kernel,
        out_shape=jax.ShapeDtypeStruct((batch, E), x.dtype),
        grid=(grid_n, grid_b),
        in_specs=[
            pl.BlockSpec((TB, pars_dim), lambda n, b: (b, 0)),
            pl.BlockSpec((pars_dim, E), lambda n, b: (0, 0), pipeline_mode=resident),
            pl.BlockSpec((1, E), lambda n, b: (0, 0), pipeline_mode=resident),
            pl.BlockSpec((E, TN), lambda n, b: (0, n), pipeline_mode=w2_mode),
            pl.BlockSpec((1, TN), lambda n, b: (0, n)),
        ],
        out_specs=pl.BlockSpec((TB, TN), lambda n, b: (b, n)),
        compiler_params=pltpu.CompilerParams(
            dimension_semantics=("parallel", "parallel"),
            vmem_limit_bytes=vmem_limit,
        ),
        cost_estimate=pl.CostEstimate(
            flops=flops, transcendentals=0, bytes_accessed=bytes_accessed),
    )(x, w1, b1, w2, b2)

    # Fast path: no slicing when embed_dim is already lane-aligned.
    if embed_dim != E:
        out = out[:, :embed_dim]
    # nn.Unflatten(dim=1, (1, embed_dim)) is a pure reshape.
    return out.reshape(batch, 1, embed_dim)


def init_params(key, pars_dim, embed_dim, dtype=jnp.float32):
    """Deterministic synthetic parameters matching the PyTorch module's shapes."""
    k1, k2, k3, k4 = jax.random.split(key, 4)
    w1 = jax.random.normal(k1, (pars_dim, embed_dim), dtype) * 0.1    # Linear1 (in, out)
    b1 = jax.random.normal(k2, (1, embed_dim), dtype) * 0.1
    w2 = jax.random.normal(k3, (embed_dim, embed_dim), dtype) * 0.1   # Linear2 (in, out)
    b2 = jax.random.normal(k4, (1, embed_dim), dtype) * 0.1
    return w1, b1, w2, b2


if __name__ == "__main__":
    # Small shapes implied by the forward pass.
    batch = 2
    pars_dim = 4
    embed_dim = 32
    # (num_heads / embed_hidden_dim / num_layers / p are unused in forward)

    key = jax.random.PRNGKey(0)
    kx, kp = jax.random.split(key)
    x = jax.random.normal(kx, (batch, pars_dim), jnp.float32)
    w1, b1, w2, b2 = init_params(kp, pars_dim, embed_dim, jnp.float32)

    # Pure-JAX reference.
    h_ref = x @ w1 + b1
    h_ref = jnp.where(h_ref > 0, h_ref, 0.01 * h_ref)
    y_ref = (h_ref @ w2 + b2).reshape(batch, 1, embed_dim)

    # f32 weights: tight tolerance against the f32 reference.
    params_f32, _ = prepare_params(w1, b1, w2, b2)
    out = jax.block_until_ready(parameter_encoder_forward(x, params_f32, embed_dim))
    assert out.shape == (batch, 1, embed_dim)
    assert jnp.allclose(out, y_ref, atol=1e-5, rtol=1e-5)

    # bf16 weights: fast bf16 MXU path (recommended at large embed_dim); looser
    # tolerance — this is an explicit precision/speed trade-off.
    params_bf16, _ = prepare_params(*(p.astype(jnp.bfloat16) for p in (w1, b1, w2, b2)))
    out_bf16 = jax.block_until_ready(parameter_encoder_forward(x, params_bf16, embed_dim))
    assert out_bf16.shape == (batch, 1, embed_dim)
    assert jnp.allclose(out_bf16.astype(jnp.float32), y_ref, atol=5e-2, rtol=5e-2)

    print("KERNEL_OK")
</pallas_src>

<mosaic_0001>
module attributes {stable_mosaic.version = 11 : i64} {
  func.func @_param_encoder_kernel(%arg0: i32, %arg1: i32, %arg2: memref<8x4xf32, #tpu.memory_space<vmem>>, %arg3: memref<4x128xf32, #tpu.memory_space<vmem>>, %arg4: memref<1x128xf32, #tpu.memory_space<vmem>>, %arg5: memref<128x128xf32, #tpu.memory_space<vmem>>, %arg6: memref<1x128xf32, #tpu.memory_space<vmem>>, %arg7: memref<8x128xf32, #tpu.memory_space<vmem>>) attributes {dimension_semantics = [#tpu.dimension_semantics<parallel>, #tpu.dimension_semantics<parallel>], iteration_bounds = array<i64: 1, 1>, scalar_prefetch = 0 : i64, scratch_operands = 0 : i64, tpu.core_type = #tpu.core_type<tc>, window_params = [{transform_indices = @transform_0, window_bounds = array<i64: 8, 4>}, {pipeline_mode = #tpu.pipeline_mode<synchronous>, transform_indices = @transform_1, window_bounds = array<i64: 4, 128>}, {pipeline_mode = #tpu.pipeline_mode<synchronous>, transform_indices = @transform_2, window_bounds = array<i64: 1, 128>}, {pipeline_mode = #tpu.pipeline_mode<synchronous>, transform_indices = @transform_3, window_bounds = array<i64: 128, 128>}, {transform_indices = @transform_4, window_bounds = array<i64: 1, 128>}, {transform_indices = @transform_5, window_bounds = array<i64: 8, 128>}]} {
    %c0 = arith.constant 0 : index
    %c0_0 = arith.constant 0 : index
    %0 = vector.load %arg2[%c0, %c0_0] : memref<8x4xf32, #tpu.memory_space<vmem>>, vector<8x4xf32>
    %c0_1 = arith.constant 0 : index
    %c0_2 = arith.constant 0 : index
    %1 = vector.load %arg3[%c0_1, %c0_2] : memref<4x128xf32, #tpu.memory_space<vmem>>, vector<4x128xf32>
    %cst = arith.constant dense<0.000000e+00> : vector<8x128xf32>
    %2 = tpu.matmul %0, %1, %cst {dimension_numbers = #tpu.dot_dimension_numbers<[1], [0], [0], [1], [0, 0, 1, 1], [], []>} : vector<8x4xf32>, vector<4x128xf32>, vector<8x128xf32> -> vector<8x128xf32>
    %c0_3 = arith.constant 0 : index
    %c0_4 = arith.constant 0 : index
    %3 = vector.load %arg4[%c0_3, %c0_4] : memref<1x128xf32, #tpu.memory_space<vmem>>, vector<1x128xf32>
    %4 = vector.broadcast %3 : vector<1x128xf32> to vector<8x128xf32>
    %5 = arith.addf %2, %4 : vector<8x128xf32>
    %cst_5 = arith.constant 0.00999999977 : f32
    %6 = vector.broadcast %cst_5 : f32 to vector<8x128xf32>
    %7 = arith.mulf %6, %5 : vector<8x128xf32>
    %8 = arith.maximumf %5, %7 : vector<8x128xf32>
    %c0_6 = arith.constant 0 : index
    %c0_7 = arith.constant 0 : index
    %9 = vector.load %arg5[%c0_6, %c0_7] : memref<128x128xf32, #tpu.memory_space<vmem>>, vector<128x128xf32>
    %cst_8 = arith.constant dense<0.000000e+00> : vector<8x128xf32>
    %10 = tpu.matmul %8, %9, %cst_8 {dimension_numbers = #tpu.dot_dimension_numbers<[1], [0], [0], [1], [0, 0, 1, 1], [], []>} : vector<8x128xf32>, vector<128x128xf32>, vector<8x128xf32> -> vector<8x128xf32>
    %c0_9 = arith.constant 0 : index
    %c0_10 = arith.constant 0 : index
    %11 = vector.load %arg6[%c0_9, %c0_10] : memref<1x128xf32, #tpu.memory_space<vmem>>, vector<1x128xf32>
    %12 = vector.broadcast %11 : vector<1x128xf32> to vector<8x128xf32>
    %13 = arith.addf %10, %12 : vector<8x128xf32>
    %c0_11 = arith.constant 0 : index
    %c0_12 = arith.constant 0 : index
    %14 = vector.load %arg7[%c0_11, %c0_12] : memref<8x128xf32, #tpu.memory_space<vmem>>, vector<8x128xf32>
    tpu.vector_store %arg7[%c0_11, %c0_12], %13 {strides = array<i32>} : memref<8x128xf32, #tpu.memory_space<vmem>>, vector<8x128xf32>,
    return
  }
  func.func @transform_0(%arg0: i32, %arg1: i32) -> (i32, i32) {
    %c0_i32 = arith.constant 0 : i32
    %c0_i32_0 = arith.constant 0 : i32
    return %arg1, %c0_i32 : i32, i32
  }
  func.func @transform_1(%arg0: i32, %arg1: i32) -> (i32, i32) {
    %c0_i32 = arith.constant 0 : i32
    %c0_i32_0 = arith.constant 0 : i32
    %c0_i32_1 = arith.constant 0 : i32
    return %c0_i32, %c0_i32_0 : i32, i32
  }
  func.func @transform_2(%arg0: i32, %arg1: i32) -> (i32, i32) {
    %c0_i32 = arith.constant 0 : i32
    %c0_i32_0 = arith.constant 0 : i32
    %c0_i32_1 = arith.constant 0 : i32
    return %c0_i32, %c0_i32_0 : i32, i32
  }
  func.func @transform_3(%arg0: i32, %arg1: i32) -> (i32, i32) {
    %c0_i32 = arith.constant 0 : i32
    %c0_i32_0 = arith.constant 0 : i32
    return %c0_i32, %arg0 : i32, i32
  }
  func.func @transform_4(%arg0: i32, %arg1: i32) -> (i32, i32) {
    %c0_i32 = arith.constant 0 : i32
    %c0_i32_0 = arith.constant 0 : i32
    return %c0_i32, %arg0 : i32, i32
  }
  func.func @transform_5(%arg0: i32, %arg1: i32) -> (i32, i32) {
    %c0_i32 = arith.constant 0 : i32
    return %arg1, %arg0 : i32, i32
  }
}

</mosaic_0001>

<llo_original>
// kernel: tpu_custom_call.1
$region0: #{tpu_custom_call.1}
  #allocation0 [shape = 'u32[]', space=smem, size = 0x4, offset = 0x4, fixed_abs, tag = 'smem constant byte address 0x4 - core index']
  #allocation1 [shape = 'u32[144,128]{1,0:T(1,128)}', space=vmem, size = 0x12000, scoped, tag = 'internal scratch']
  %s0 = inlined_call_operand.hbm [shape: f32[2,4], index: 0, kind: input, shape index: {}]
  %s1 = inlined_call_operand.hbm [shape: f32[4,128], index: 1, kind: input, shape index: {}]
  %s2 = inlined_call_operand.vmem [shape: f32[1,128], index: 2, kind: input, shape index: {}]
  %s3 = inlined_call_operand.hbm [shape: f32[128,128], index: 3, kind: input, shape index: {}]
  %s4 = inlined_call_operand.vmem [shape: f32[1,128], index: 4, kind: input, shape index: {}]
  %s5 = inlined_call_operand.hbm [shape: f32[2,128], index: 5, kind: output, shape index: {}]
  %s6 = sld [smem:[#allocation0]]
  $region42: #{tpu_custom_call.1} parent=0
    _
  %s8 = ssub.s32 1, %s6
  %s9 = scalar_select 0, %s8, %s6
  $region1: #{tpu_custom_call.1} parent=0
    #allocation2 [shape = 'u8[4096]{0}', space=vmem, size = 0x1000, scoped, tag = 'input window, operand 0, single buffered']
    #allocation3 [shape = 's32[1]{0}', space=sflag, size = 0x4, scoped, tag = 'scoped memory for tpu_custom_call.1']
    #allocation4 [shape = 's32[1]{0}', space=sflag, size = 0x4, scoped, tag = 'scoped memory for tpu_custom_call.1']
    #allocation5 [shape = 'u8[2048]{0}', space=vmem, size = 0x800, scoped, tag = 'input window, operand 1, single buffered']
    #allocation6 [shape = 's32[1]{0}', space=sflag, size = 0x4, scoped, tag = 'scoped memory for tpu_custom_call.1']
    #allocation7 [shape = 'u8[65536]{0}', space=vmem, size = 0x10000, scoped, tag = 'input window, operand 3, single buffered']
    #allocation8 [shape = 'u8[4096]{0}', space=vmem, size = 0x1000, scoped, tag = 'output window, operand 0, single buffered']
    %10 = vsyncpa [#allocation3], 0
    %11 = vsyncpa [#allocation6], 0
    %12 = vsyncpa [#allocation4], 0
    // Predicated region
    $region2: #{tpu_custom_call.1} parent=1 // pred_check
      _
    $region3: #{tpu_custom_call.1} parent=1 // pred_check_branch
      %14 = sbr.rel (0) target = $region5
    $region4: #{tpu_custom_call.1} parent=1 // pred_region
      %s16 = ssub.s32 128, 32
      %17 = vsyncadd [#allocation3], %s16
      %s18 = sshll.u32 [#allocation2], 4
      %s19 = int_to_ptr.vmem [resolvable:$true] %s18
      %24 = dma.hbm_to_vmem [thread:$0]  %s0, 32, %s19, [#allocation3], 32, 32, 2
    $region5: #{tpu_custom_call.1} parent=1 // pred_fallthru
      _
    // Predicated region
    $region6: #{tpu_custom_call.1} parent=1 // pred_check
      _
    $region7: #{tpu_custom_call.1} parent=1 // pred_check_branch
      %26 = sbr.rel (0) target = $region9
    $region8: #{tpu_custom_call.1} parent=1 // pred_region
      %s28 = ssub.s32 64, 64
      %29 = vsyncadd [#allocation6], %s28
      %s31 = sshll.u32 [#allocation5], 4
      %s32 = int_to_ptr.vmem [resolvable:$true] %s31
      %34 = dma.hbm_to_vmem [thread:$0]  %s1, 64, %s32, [#allocation6]
    $region9: #{tpu_custom_call.1} parent=1 // pred_fallthru
      _
    // Predicated region
    $region10: #{tpu_custom_call.1} parent=1 // pred_check
      _
    $region11: #{tpu_custom_call.1} parent=1 // pred_check_branch
      %36 = sbr.rel (0) target = $region13
    $region12: #{tpu_custom_call.1} parent=1 // pred_region
      _
    $region13: #{tpu_custom_call.1} parent=1 // pred_fallthru
      _
    // Predicated region
    $region14: #{tpu_custom_call.1} parent=1 // pred_check
      _
    $region15: #{tpu_custom_call.1} parent=1 // pred_check_branch
      %38 = sbr.rel (0) target = $region17
    $region16: #{tpu_custom_call.1} parent=1 // pred_region
      %s40 = ssub.s32 2048, 2048
      %41 = vsyncadd [#allocation6], %s40
      %s42 = sshll.u32 [#allocation7], 4
      %s43 = int_to_ptr.vmem [resolvable:$true] %s42
      %48 = dma.hbm_to_vmem [thread:$0]  %s3, 2048, %s43, [#allocation6], 128, 128, 8
    $region17: #{tpu_custom_call.1} parent=1 // pred_fallthru
      _
    // Predicated region
    $region18: #{tpu_custom_call.1} parent=1 // pred_check
      _
    $region19: #{tpu_custom_call.1} parent=1 // pred_check_branch
      %50 = sbr.rel (0) target = $region21
    $region20: #{tpu_custom_call.1} parent=1 // pred_region
      _
    $region21: #{tpu_custom_call.1} parent=1 // pred_fallthru
      _
    // Predicated region
    $region22: #{tpu_custom_call.1} parent=1 // pred_check
      _
    $region23: #{tpu_custom_call.1} parent=1 // pred_check_branch
      %52 = sbr.rel (0) target = $region25
    $region24: #{tpu_custom_call.1} parent=1 // pred_region
      %53 = dma.done [#allocation3], 128
    $region25: #{tpu_custom_call.1} parent=1 // pred_fallthru
      _
    // Predicated region
    $region26: #{tpu_custom_call.1} parent=1 // pred_check
      _
    $region27: #{tpu_custom_call.1} parent=1 // pred_check_branch
      %55 = sbr.rel (0) target = $region29
    $region28: #{tpu_custom_call.1} parent=1 // pred_region
      %56 = dma.done [#allocation6], 64
    $region29: #{tpu_custom_call.1} parent=1 // pred_fallthru
      _
    // Predicated region
    $region30: #{tpu_custom_call.1} parent=1 // pred_check
      _
    $region31: #{tpu_custom_call.1} parent=1 // pred_check_branch
      %58 = sbr.rel (0) target = $region33
    $region32: #{tpu_custom_call.1} parent=1 // pred_region
      %59 = dma.done [#allocation6], 2048
    $region33: #{tpu_custom_call.1} parent=1 // pred_fallthru
      _
    %v60 = vld [vmem:[#allocation2] sm:$0xff]
    %v61 = vld [vmem:[#allocation5] sm:$0xf]
    %v62 = vld [vmem:[%s2] sm:$0x1]
    %v64 = vlaneseq
    %v65 = vshrl.u32 %v64, 7
    %v66 = vsub.s32 0, %v65
    %v67 = vrot.slane %v62, %v66
    %vm69 = vcmask 31744
    %v71 = vsel %vm69, %v60, 0
    %vm73 = vcmask 1043456
    %v75 = vsel %vm73, %v61, 0
    %77 = vmatprep.subr.mxu0 0.0
    %78 = vmatpush1.msra.mxu0 %v75
    %79 = vmatprep.subr.mxu0 0.0
    %80 = vmatpush1.msra.mxu0 0.0
    %81 = vmatprep.subr.mxu0 0.0
    %82 = vmatpush1.msra.mxu0 0.0
    %83 = vmatprep.subr.mxu0 0.0
    %84 = vmatpush1.msra.mxu0 0.0
    %85 = vmatprep.subr.mxu0 0.0
    %86 = vmatpush1.msra.mxu0 0.0
    %87 = vmatprep.subr.mxu0 0.0
    %88 = vmatpush1.msra.mxu0 0.0
    %89 = vmatprep.subr.mxu0 0.0
    %90 = vmatpush1.msra.mxu0 0.0
    %91 = vmatprep.subr.mxu0 0.0
    %92 = vmatpush1.msra.mxu0 0.0
    %93 = vmatprep.subr.mxu0 0.0
    %94 = vmatpush1.msra.mxu0 0.0
    %95 = vmatprep.subr.mxu0 0.0
    %96 = vmatpush1.msra.mxu0 0.0
    %97 = vmatprep.subr.mxu0 0.0
    %98 = vmatpush1.msra.mxu0 0.0
    %99 = vmatprep.subr.mxu0 0.0
    %100 = vmatpush1.msra.mxu0 0.0
    %101 = vmatprep.subr.mxu0 0.0
    %102 = vmatpush1.msra.mxu0 0.0
    %103 = vmatprep.subr.mxu0 0.0
    %104 = vmatpush1.msra.mxu0 0.0
    %105 = vmatprep.subr.mxu0 0.0
    %106 = vmatpush1.msra.mxu0 0.0
    %107 = vmatprep.subr.mxu0 0.0
    %108 = vmatpush1.msra.mxu0 0.0
    %109 = vmatprep.subr.mxu0 0.0
    %110 = vmatpush1.msra.mxu0 0.0
    %111 = vmatprep.subr.mxu0 0.0
    %112 = vmatpush1.msra.mxu0 0.0
    %113 = vmatprep.subr.mxu0 0.0
    %114 = vmatpush1.msra.mxu0 0.0
    %115 = vmatprep.subr.mxu0 0.0
    %116 = vmatpush1.msra.mxu0 0.0
    %117 = vmatprep.subr.mxu0 0.0
    %118 = vmatpush1.msra.mxu0 0.0
    %119 = vmatprep.subr.mxu0 0.0
    %120 = vmatpush1.msra.mxu0 0.0
    %121 = vmatprep.subr.mxu0 0.0
    %122 = vmatpush1.msra.mxu0 0.0
    %123 = vmatprep.subr.mxu0 0.0
    %124 = vmatpush1.msra.mxu0 0.0
    %125 = vmatprep.subr.mxu0 0.0
    %126 = vmatpush1.msra.mxu0 0.0
    %127 = vmatprep.subr.mxu0 0.0
    %128 = vmatpush1.msra.mxu0 0.0
    %129 = vmatprep.subr.mxu0 0.0
    %130 = vmatpush1.msra.mxu0 0.0
    %131 = vmatprep.subr.mxu0 0.0
    %132 = vmatpush1.msra.mxu0 0.0
    %133 = vmatprep.subr.mxu0 0.0
    %134 = vmatpush1.msra.mxu0 0.0
    %135 = vmatprep.subr.mxu0 0.0
    %136 = vmatpush1.msra.mxu0 0.0
    %137 = vmatprep.subr.mxu0 0.0
    %138 = vmatpush1.msra.mxu0 0.0
    %139 = vmatprep.subr.mxu0 0.0
    %140 = vmatpush1.msra.mxu0 0.0
    %141 = vmatprep.mubr.f32.mxu0 0.0
    %142 = vmatmul.mubr.f32.gmra.mrb[0].mxu0 %v71
    %v143 = vpop.f32.mrb[0].mxu0
    %v144 = vadd.f32 %v67, %v143
    %v145 = vpop.f32.mrb[0].mxu0
    %146 = vdwg.mxu0
    %v147 = vmul.f32 %v144, 0.01
    %v148 = vmax.f32 %v144, %v147
    %v149 = vld [vmem:[#allocation7] sm:$0xff]
    %v150 = vld [vmem:[#allocation7 + $0x8] sm:$0xff]
    %v151 = vld [vmem:[#allocation7 + $0x10] sm:$0xff]
    %v152 = vld [vmem:[#allocation7 + $0x18] sm:$0xff]
    %v153 = vld [vmem:[#allocation7 + $0x20] sm:$0xff]
    %v154 = vld [vmem:[#allocation7 + $0x28] sm:$0xff]
    %v155 = vld [vmem:[#allocation7 + $0x30] sm:$0xff]
    %v156 = vld [vmem:[#allocation7 + $0x38] sm:$0xff]
    %v157 = vld [vmem:[#allocation7 + $0x40] sm:$0xff]
    %v158 = vld [vmem:[#allocation7 + $0x48] sm:$0xff]
    %v159 = vld [vmem:[#allocation7 + $0x50] sm:$0xff]
    %v160 = vld [vmem:[#allocation7 + $0x58] sm:$0xff]
    %v161 = vld [vmem:[#allocation7 + $0x60] sm:$0xff]
    %v162 = vld [vmem:[#allocation7 + $0x68] sm:$0xff]
    %v163 = vld [vmem:[#allocation7 + $0x70] sm:$0xff]
    %v164 = vld [vmem:[#allocation7 + $0x78] sm:$0xff]
    %v165 = vld [vmem:[%s4] sm:$0x1]
    %v167 = vlaneseq
    %v168 = vshrl.u32 %v167, 7
    %v169 = vsub.s32 0, %v168
    %v170 = vrot.slane %v165, %v169
    %172 = vmatprep.subr.mxu0 0.0
    %173 = vmatpush1.msra.mxu0 %v149
    %174 = vmatprep.subr.mxu0 0.0
    %175 = vmatpush1.msra.mxu0 %v150
    %176 = vmatprep.subr.mxu0 0.0
    %177 = vmatpush1.msra.mxu0 %v151
    %178 = vmatprep.subr.mxu0 0.0
    %179 = vmatpush1.msra.mxu0 %v152
    %180 = vmatprep.subr.mxu0 0.0
    %181 = vmatpush1.msra.mxu0 %v153
    %182 = vmatprep.subr.mxu0 0.0
    %183 = vmatpush1.msra.mxu0 %v154
    %184 = vmatprep.subr.mxu0 0.0
    %185 = vmatpush1.msra.mxu0 %v155
    %186 = vmatprep.subr.mxu0 0.0
    %187 = vmatpush1.msra.mxu0 %v156
    %188 = vmatprep.subr.mxu0 0.0
    %189 = vmatpush1.msra.mxu0 %v157
    %190 = vmatprep.subr.mxu0 0.0
    %191 = vmatpush1.msra.mxu0 %v158
    %192 = vmatprep.subr.mxu0 0.0
    %193 = vmatpush1.msra.mxu0 %v159
    %194 = vmatprep.subr.mxu0 0.0
    %195 = vmatpush1.msra.mxu0 %v160
    %196 = vmatprep.subr.mxu0 0.0
    %197 = vmatpush1.msra.mxu0 %v161
    %198 = vmatprep.subr.mxu0 0.0
    %199 = vmatpush1.msra.mxu0 %v162
    %200 = vmatprep.subr.mxu0 0.0
    %201 = vmatpush1.msra.mxu0 %v163
    %202 = vmatprep.subr.mxu0 0.0
    %203 = vmatpush1.msra.mxu0 %v164
    %204 = vmatprep.subr.mxu0 0.0
    %205 = vmatpush1.msra.mxu0 0.0
    %206 = vmatprep.subr.mxu0 0.0
    %207 = vmatpush1.msra.mxu0 0.0
    %208 = vmatprep.subr.mxu0 0.0
    %209 = vmatpush1.msra.mxu0 0.0
    %210 = vmatprep.subr.mxu0 0.0
    %211 = vmatpush1.msra.mxu0 0.0
    %212 = vmatprep.subr.mxu0 0.0
    %213 = vmatpush1.msra.mxu0 0.0
    %214 = vmatprep.subr.mxu0 0.0
    %215 = vmatpush1.msra.mxu0 0.0
    %216 = vmatprep.subr.mxu0 0.0
    %217 = vmatpush1.msra.mxu0 0.0
    %218 = vmatprep.subr.mxu0 0.0
    %219 = vmatpush1.msra.mxu0 0.0
    %220 = vmatprep.subr.mxu0 0.0
    %221 = vmatpush1.msra.mxu0 0.0
    %222 = vmatprep.subr.mxu0 0.0
    %223 = vmatpush1.msra.mxu0 0.0
    %224 = vmatprep.subr.mxu0 0.0
    %225 = vmatpush1.msra.mxu0 0.0
    %226 = vmatprep.subr.mxu0 0.0
    %227 = vmatpush1.msra.mxu0 0.0
    %228 = vmatprep.subr.mxu0 0.0
    %229 = vmatpush1.msra.mxu0 0.0
    %230 = vmatprep.subr.mxu0 0.0
    %231 = vmatpush1.msra.mxu0 0.0
    %232 = vmatprep.subr.mxu0 0.0
    %233 = vmatpush1.msra.mxu0 0.0
    %234 = vmatprep.subr.mxu0 0.0
    %235 = vmatpush1.msra.mxu0 0.0
    %236 = vmatprep.mubr.f32.mxu0 0.0
    %237 = vmatmul.mubr.f32.gmra.mrb[0].mxu0 %v148
    %v238 = vpop.f32.mrb[0].mxu0
    %v239 = vadd.f32 %v170, %v238
    %v240 = vpop.f32.mrb[0].mxu0
    %241 = vdwg.mxu0
    %242 = vst [vmem:[#allocation8] sm:$0xff] %v239
    // Predicated region
    $region34: #{tpu_custom_call.1} parent=1 // pred_check
      _
    $region35: #{tpu_custom_call.1} parent=1 // pred_check_branch
      %244 = sbr.rel (0) target = $region37
    $region36: #{tpu_custom_call.1} parent=1 // pred_region
      %s246 = ssub.s32 128, 32
      %247 = vsyncadd [#allocation4], %s246
      %s248 = sshll.u32 [#allocation8], 4
      %s249 = int_to_ptr.vmem [resolvable:$true] %s248
      %254 = dma.vmem_to_hbm [thread:$0]  %s249, 32, %s5, [#allocation4], 32, 32, 2
    $region37: #{tpu_custom_call.1} parent=1 // pred_fallthru
      _
    // Predicated region
    $region38: #{tpu_custom_call.1} parent=1 // pred_check
      _
    $region39: #{tpu_custom_call.1} parent=1 // pred_check_branch
      %256 = sbr.rel (0) target = $region41
    $region40: #{tpu_custom_call.1} parent=1 // pred_region
      %257 = dma.done [#allocation4], 128
    $region41: #{tpu_custom_call.1} parent=1 // pred_fallthru
      _
    %258 = vsyncpa [#allocation3], 1
    %259 = vsyncpa [#allocation6], 1
    %260 = vsyncpa [#allocation4], 1

</llo_original>
